<compile_context>
chip_gen: v7x
topology: tpu7x:2x2x1
jax: 0.10.0
libtpu: 0.0.40
codegen_flags: <defaults>
</compile_context>

<pallas_src>
import jax
import jax.numpy as jnp
from jax.experimental import pallas as pl
from jax.experimental.pallas import tpu as pltpu

# ------------------------------ configuration (small) ------------------------------
BATCH = 8                        # batch size for the contrastive loss
C, H, W = 4, 16, 16              # NCHW audio "spectrogram" input
MIN_MIDI, MAX_MIDI = 60, 75
NUM_LABELS = MAX_MIDI - MIN_MIDI + 1      # 16
OUTPUT_DIM = 32                  # output_dim == embedding_dim
HIDDEN = OUTPUT_DIM * 2          # embedding_dim * 2
BN_EPS = 1e-5

# bf16 small-weight slab layout (rows are 16-aligned => clean bf16 sublane tiles)
W1_ROW = NUM_LABELS              # 16
W2_ROW = W1_ROW + OUTPUT_DIM     # 48
WSLAB_ROWS = W2_ROW + HIDDEN     # 112

# f32 bias slab layout (one (8,128) vreg, one row per vector)
ROW_B_ENC, ROW_B1, ROW_GAMMA, ROW_BETA, ROW_B2 = 0, 1, 2, 3, 4

# packed output slab layout: (BATCH, 128) f32
LOGIT_LANE = OUTPUT_DIM          # 32 .. 32+B-1
LOSS_LANE = LOGIT_LANE + 8       # 40: loss, 41: loss_a, 42: loss_n


def _vmem():
    return pl.BlockSpec(memory_space=pltpu.MemorySpace.VMEM)


def _smem():
    return pl.BlockSpec(memory_space=pltpu.MemorySpace.SMEM)


# --------------------------------- fused Pallas kernel ----------------------------------
def _fused_kernel(x_ref, labels_ref, wenc_t_ref, wslab_ref, vslab_ref, scale_ref, out_ref):
    f32 = jnp.float32
    bf16 = jnp.bfloat16
    b = x_ref.shape[0]

    # ---- carve the packed parameter slabs (static slices, no extra DMAs) ----
    emb_w = wslab_ref[pl.ds(0, NUM_LABELS), pl.ds(0, OUTPUT_DIM)]        # [16, 32] bf16
    w1 = wslab_ref[pl.ds(W1_ROW, OUTPUT_DIM), pl.ds(0, HIDDEN)]          # [32, 64] bf16
    w2 = wslab_ref[pl.ds(W2_ROW, HIDDEN), pl.ds(0, OUTPUT_DIM)]          # [64, 32] bf16
    b_enc = vslab_ref[pl.ds(ROW_B_ENC, 1), pl.ds(0, OUTPUT_DIM)]         # [1, 32] f32
    b1 = vslab_ref[pl.ds(ROW_B1, 1), pl.ds(0, HIDDEN)]                   # [1, 64] f32
    gamma = vslab_ref[pl.ds(ROW_GAMMA, 1), pl.ds(0, HIDDEN)]             # [1, 64] f32
    beta = vslab_ref[pl.ds(ROW_BETA, 1), pl.ds(0, HIDDEN)]               # [1, 64] f32
    b2 = vslab_ref[pl.ds(ROW_B2, 1), pl.ds(0, OUTPUT_DIM)]               # [1, 32] f32

    # ---- forward(x): stand-in linear audio encoder (the injected `self.model`) ----
    # w_enc is stored transposed [D, C*H*W] (lane-dense); trans-B dot_general on the MXU.
    x_bf = x_ref[...].astype(bf16)                                       # [B, 1024]
    audio = jax.lax.dot_general(
        x_bf, wenc_t_ref[...],
        dimension_numbers=(((1,), (1,)), ((), ())),
        preferred_element_type=f32) + b_enc                              # [B, D] f32

    # ---- encode_note_labels: labels @ emb -> Linear -> BatchNorm1d -> ReLU -> Linear ----
    labels_bf = labels_ref[...].astype(bf16)                             # [B, L] (0/1 exact)
    joint = jnp.dot(labels_bf, emb_w, preferred_element_type=f32)        # [B, D]
    h = jnp.dot(joint.astype(bf16), w1, preferred_element_type=f32) + b1 # [B, 2D]
    # BatchNorm1d (training-mode batch statistics, biased variance, eps=1e-5), all f32.
    mu = jnp.mean(h, axis=0, keepdims=True)
    var = jnp.mean((h - mu) ** 2, axis=0, keepdims=True)
    h = (h - mu) * jax.lax.rsqrt(var + BN_EPS)
    h = h * gamma + beta
    h = jnp.maximum(h, 0.0)                                              # ReLU
    chord = jnp.dot(h.astype(bf16), w2, preferred_element_type=f32) + b2 # [B, D]

    # ---- contrastive_loss ----
    # L2 normalize via rsqrt (EUP).  NOTE: no epsilon, matching torch semantics.
    a_n = audio * jax.lax.rsqrt(jnp.sum(audio * audio, axis=1, keepdims=True))
    c_n = chord * jax.lax.rsqrt(jnp.sum(chord * chord, axis=1, keepdims=True))

    # sim = (a_n @ c_n.T) * exp(temperature); exp(temp) is precomputed and arrives in SMEM.
    sim = jax.lax.dot_general(
        a_n, c_n, dimension_numbers=(((1,), (1,)), ((), ())),
        preferred_element_type=f32) * scale_ref[0, 0]                    # [B, B] logits

    # Target matrix via Hamming distance from a single gram matmul:
    #   g = labels @ labels.T ; note counts are diag(g) (labels are 0/1),
    #   ham[i,j] = cnt_i + cnt_j - 2*g[i,j] == 0  iff rows i and j are identical.
    g = jax.lax.dot_general(labels_bf, labels_bf,
                            dimension_numbers=(((1,), (1,)), ((), ())),
                            preferred_element_type=f32)                  # [B, B]
    rr = jax.lax.broadcasted_iota(jnp.int32, (b, b), 0)
    cc = jax.lax.broadcasted_iota(jnp.int32, (b, b), 1)
    diag = jnp.where(rr == cc, g, 0.0)
    cnt_col = jnp.sum(diag, axis=1, keepdims=True)                       # [B, 1]
    cnt_row = jnp.sum(diag, axis=0, keepdims=True)                       # [1, B]
    ham = cnt_col + cnt_row - 2.0 * g
    match = (ham == 0.0).astype(f32)                                     # symmetric [B, B]
    # torch: tgt = match / match.sum(1)  (column-normalized because match is symmetric)
    tgt_col = match / jnp.sum(match, axis=0, keepdims=True)              # for softmax(dim=0)
    tgt_row = match / jnp.sum(match, axis=1, keepdims=True)              # == torch tgt.T

    def softmax_and_log(z, axis):
        zs = z - jnp.max(z, axis=axis, keepdims=True)
        e = jnp.exp(zs)
        s = jnp.sum(e, axis=axis, keepdims=True)
        # EUP reciprocal; clamp p to [0,1] so log(1-p) below can never see a negative.
        p = jnp.clip(e * pl.reciprocal(s, approx=True), 0.0, 1.0)
        logp = zs - jnp.log(s)                  # log-softmax (more precise than log(p))
        return p, logp

    def bce(p, logp, y):                        # torch BCE: clamp logs at -100, mean-reduce
        logp = jnp.maximum(logp, -100.0)
        # NaN-safe: 1-p >= 0 (p clipped); log(0) = -inf is clamped to -100.
        log1mp = jnp.maximum(jnp.log(jnp.maximum(1.0 - p, 0.0)), -100.0)
        return -jnp.mean(y * logp + (1.0 - y) * log1mp)

    p0, lp0 = softmax_and_log(sim, 0)           # softmax over dim 0 (audio axis)
    p1, lp1 = softmax_and_log(sim, 1)           # == softmax(sim.T, 0).T, no transpose
    loss_a = bce(p0, lp0, tgt_col)
    loss_n = bce(p1, lp1, tgt_row)
    loss = 0.5 * (loss_a + loss_n)

    # ---- pack everything into ONE lane-dense (B, 128) f32 output slab -> single DMA ----
    out_ref[...] = jnp.zeros_like(out_ref)
    out_ref[:, pl.ds(0, OUTPUT_DIM)] = audio                              # lanes [0, 32)
    out_ref[:, pl.ds(LOGIT_LANE, b)] = sim                                # lanes [32, 40)
    lane8 = jax.lax.broadcasted_iota(jnp.int32, (1, 8), 1)
    out_ref[pl.ds(0, 1), pl.ds(LOSS_LANE, 8)] = jnp.where(
        lane8 == 0, loss,
        jnp.where(lane8 == 1, loss_a,
                  jnp.where(lane8 == 2, loss_n, 0.0)))                    # row 0, lanes 40..42


# ------------------------------------ wrapper --------------------------------------
def prepare_params(params):
    """One-time packing / casting of the module parameters (hoisted out of the step)."""
    bf = jnp.bfloat16
    w_enc_t = params["w_enc"].T.astype(bf)                               # [D, C*H*W]

    wslab = jnp.zeros((WSLAB_ROWS, 128), bf)
    wslab = wslab.at[0:NUM_LABELS, 0:OUTPUT_DIM].set(params["emb_w"].astype(bf))
    wslab = wslab.at[W1_ROW:W1_ROW + OUTPUT_DIM, 0:HIDDEN].set(params["w1"].astype(bf))
    wslab = wslab.at[W2_ROW:W2_ROW + HIDDEN, 0:OUTPUT_DIM].set(params["w2"].astype(bf))

    vslab = jnp.zeros((8, 128), jnp.float32)
    vslab = vslab.at[ROW_B_ENC, 0:OUTPUT_DIM].set(params["b_enc"][0])
    vslab = vslab.at[ROW_B1, 0:HIDDEN].set(params["b1"][0])
    vslab = vslab.at[ROW_GAMMA, 0:HIDDEN].set(params["gamma"][0])
    vslab = vslab.at[ROW_BETA, 0:HIDDEN].set(params["beta"][0])
    vslab = vslab.at[ROW_B2, 0:OUTPUT_DIM].set(params["b2"][0])

    scale = jnp.exp(params["temp"]).astype(jnp.float32)                  # (1,1) exp(temperature)
    return w_enc_t, wslab, vslab, scale


@jax.jit
def contrastive_step(x, note_labels, w_enc_t, wslab, vslab, scale):
    """Fused forward(x) + contrastive_loss(forward(x), note_labels) in one pallas_call.

    Returns (audio_embeddings, (loss, (loss_a, loss_n, logits))).
    """
    b = x.shape[0]
    x_flat = x.reshape(b, -1)                      # glue: flatten NCHW row-major (no copy)

    out = pl.pallas_call(
        _fused_kernel,
        out_shape=jax.ShapeDtypeStruct((b, 128), jnp.float32),           # packed output slab
        in_specs=[_vmem(), _vmem(), _vmem(), _vmem(), _vmem(), _smem()],
        out_specs=_vmem(),
    )(x_flat, note_labels, w_enc_t, wslab, vslab, scale)

    audio_emb = out[:, 0:OUTPUT_DIM]
    logits = out[:, LOGIT_LANE:LOGIT_LANE + b]
    loss = out[0, LOSS_LANE]
    loss_a = out[0, LOSS_LANE + 1]
    loss_n = out[0, LOSS_LANE + 2]
    return audio_emb, (loss, (loss_a, loss_n, logits))


# -------------------------------- reference (plain JAX) ------------------------------
def _reference(x_flat, labels, p):
    """Plain-JAX reference with the same bf16 MXU-operand casts as the kernel."""
    bf, f32 = jnp.bfloat16, jnp.float32
    audio = jnp.dot(x_flat.astype(bf), p["w_enc"].astype(bf),
                    preferred_element_type=f32) + p["b_enc"]
    joint = jnp.dot(labels.astype(bf), p["emb_w"].astype(bf), preferred_element_type=f32)
    h = jnp.dot(joint.astype(bf), p["w1"].astype(bf), preferred_element_type=f32) + p["b1"]
    mu = h.mean(0, keepdims=True)
    var = ((h - mu) ** 2).mean(0, keepdims=True)
    h = (h - mu) / jnp.sqrt(var + BN_EPS) * p["gamma"] + p["beta"]
    h = jnp.maximum(h, 0.0)
    chord = jnp.dot(h.astype(bf), p["w2"].astype(bf), preferred_element_type=f32) + p["b2"]

    a_n = audio / jnp.linalg.norm(audio, axis=1, keepdims=True)
    c_n = chord / jnp.linalg.norm(chord, axis=1, keepdims=True)
    sim = (a_n @ c_n.T) * jnp.exp(p["temp"][0, 0])

    match = jnp.all(labels[:, None, :] == labels[None, :, :], axis=2).astype(f32)
    tgt = match / match.sum(1)                      # torch broadcasting semantics

    def sm0(z):
        z = z - z.max(0, keepdims=True)
        e = jnp.exp(z)
        return e / e.sum(0, keepdims=True)

    def bce(pp, y):
        return -jnp.mean(y * jnp.maximum(jnp.log(pp), -100.0)
                         + (1 - y) * jnp.maximum(jnp.log(1 - pp), -100.0))

    la = bce(sm0(sim), tgt)
    ln = bce(sm0(sim.T), tgt)
    return (la + ln) / 2, la, ln, audio, sim


# ---------------------------------- parameter init -----------------------------------
def init_params(key):
    k = jax.random.split(key, 4)
    limit = (6.0 / (NUM_LABELS + OUTPUT_DIM)) ** 0.5       # xavier_uniform for embedding
    return {
        "emb_w": jax.random.uniform(k[0], (NUM_LABELS, OUTPUT_DIM), jnp.float32,
                                    -limit, limit),
        "w1": jax.random.normal(k[1], (OUTPUT_DIM, HIDDEN), jnp.float32) * 0.05,
        "b1": jnp.zeros((1, HIDDEN), jnp.float32),
        "gamma": jnp.ones((1, HIDDEN), jnp.float32),
        "beta": jnp.zeros((1, HIDDEN), jnp.float32),
        "w2": jax.random.normal(k[2], (HIDDEN, OUTPUT_DIM), jnp.float32) * 0.05,
        "b2": jnp.zeros((1, OUTPUT_DIM), jnp.float32),
        "temp": jnp.full((1, 1), 0.07, jnp.float32),        # nn.Parameter(0.07)
        "w_enc": jax.random.normal(k[3], (C * H * W, OUTPUT_DIM), jnp.float32) * 0.02,
        "b_enc": jnp.zeros((1, OUTPUT_DIM), jnp.float32),
    }


# --------------------------------------- main ----------------------------------------
if __name__ == "__main__":
    key = jax.random.PRNGKey(0)
    kx, kl, kp = jax.random.split(key, 3)
    params = init_params(kp)
    w_enc_t, wslab, vslab, scale = prepare_params(params)   # one-time packing / bf16 casts

    # audio input, NCHW as in PyTorch
    x = jax.random.normal(kx, (BATCH, C, H, W), jnp.float32)
    # multi-hot chord labels [BATCH, NUM_LABELS]
    note_labels = jax.random.bernoulli(kl, 0.25, (BATCH, NUM_LABELS)).astype(jnp.float32)

    # single fused pallas_call: forward(x) + contrastive_loss(forward(x), note_labels)
    audio_emb, (loss, (loss_a, loss_n, logits)) = contrastive_step(
        x, note_labels, w_enc_t, wslab, vslab, scale)
    jax.block_until_ready((audio_emb, loss, loss_a, loss_n, logits))

    # sanity-check against a plain-JAX reference
    ref_loss, ref_la, ref_ln, ref_audio, ref_logits = _reference(
        x.reshape(BATCH, -1), note_labels, params)

    assert audio_emb.shape == (BATCH, OUTPUT_DIM)
    assert logits.shape == (BATCH, BATCH)
    assert jnp.isfinite(loss)
    assert jnp.allclose(audio_emb, ref_audio, atol=1e-3, rtol=1e-3)
    assert jnp.allclose(logits, ref_logits, atol=2e-3, rtol=2e-3)
    assert jnp.allclose(loss, ref_loss, atol=5e-3, rtol=5e-3)
    assert jnp.allclose(loss_a, ref_la, atol=5e-3, rtol=5e-3)
    assert jnp.allclose(loss_n, ref_ln, atol=5e-3, rtol=5e-3)

    print("KERNEL_OK")
</pallas_src>

<mosaic_0001>
module attributes {stable_mosaic.version = 11 : i64} {
  func.func @_fused_kernel(%arg0: memref<8x1024xf32, #tpu.memory_space<vmem>>, %arg1: memref<8x16xf32, #tpu.memory_space<vmem>>, %arg2: memref<32x1024xbf16, #tpu.memory_space<vmem>>, %arg3: memref<112x128xbf16, #tpu.memory_space<vmem>>, %arg4: memref<8x128xf32, #tpu.memory_space<vmem>>, %arg5: memref<1x1xf32, #tpu.memory_space<smem>>, %arg6: memref<8x128xf32, #tpu.memory_space<vmem>>) attributes {dimension_semantics = [], scalar_prefetch = 0 : i64, scratch_operands = 0 : i64, tpu.core_type = #tpu.core_type<tc>} {
    %c0 = arith.constant 0 : index
    %c0_0 = arith.constant 0 : index
    %0 = vector.load %arg3[%c0, %c0_0] : memref<112x128xbf16, #tpu.memory_space<vmem>>, vector<16x32xbf16>
    %c16 = arith.constant 16 : index
    %c0_1 = arith.constant 0 : index
    %1 = vector.load %arg3[%c16, %c0_1] : memref<112x128xbf16, #tpu.memory_space<vmem>>, vector<32x64xbf16>
    %c48 = arith.constant 48 : index
    %c0_2 = arith.constant 0 : index
    %2 = vector.load %arg3[%c48, %c0_2] : memref<112x128xbf16, #tpu.memory_space<vmem>>, vector<64x32xbf16>
    %c0_3 = arith.constant 0 : index
    %c0_4 = arith.constant 0 : index
    %3 = vector.load %arg4[%c0_3, %c0_4] : memref<8x128xf32, #tpu.memory_space<vmem>>, vector<1x32xf32>
    %c1 = arith.constant 1 : index
    %c0_5 = arith.constant 0 : index
    %4 = vector.load %arg4[%c1, %c0_5] : memref<8x128xf32, #tpu.memory_space<vmem>>, vector<1x64xf32>
    %c2 = arith.constant 2 : index
    %c0_6 = arith.constant 0 : index
    %5 = vector.load %arg4[%c2, %c0_6] : memref<8x128xf32, #tpu.memory_space<vmem>>, vector<1x64xf32>
    %c3 = arith.constant 3 : index
    %c0_7 = arith.constant 0 : index
    %6 = vector.load %arg4[%c3, %c0_7] : memref<8x128xf32, #tpu.memory_space<vmem>>, vector<1x64xf32>
    %c4 = arith.constant 4 : index
    %c0_8 = arith.constant 0 : index
    %7 = vector.load %arg4[%c4, %c0_8] : memref<8x128xf32, #tpu.memory_space<vmem>>, vector<1x32xf32>
    %c0_9 = arith.constant 0 : index
    %c0_10 = arith.constant 0 : index
    %8 = vector.load %arg0[%c0_9, %c0_10] : memref<8x1024xf32, #tpu.memory_space<vmem>>, vector<8x1024xf32>
    %9 = arith.truncf %8 : vector<8x1024xf32> to vector<8x1024xbf16>
    %c0_11 = arith.constant 0 : index
    %c0_12 = arith.constant 0 : index
    %10 = vector.load %arg2[%c0_11, %c0_12] : memref<32x1024xbf16, #tpu.memory_space<vmem>>, vector<32x1024xbf16>
    %cst = arith.constant dense<0.000000e+00> : vector<8x32xf32>
    %11 = tpu.matmul %9, %10, %cst {dimension_numbers = #tpu.dot_dimension_numbers<[1], [1], [0], [0], [0, 0, 1, 0], [], []>} : vector<8x1024xbf16>, vector<32x1024xbf16>, vector<8x32xf32> -> vector<8x32xf32>
    %12 = vector.broadcast %3 : vector<1x32xf32> to vector<8x32xf32>
    %13 = arith.addf %11, %12 : vector<8x32xf32>
    %c0_13 = arith.constant 0 : index
    %c0_14 = arith.constant 0 : index
    %14 = vector.load %arg1[%c0_13, %c0_14] : memref<8x16xf32, #tpu.memory_space<vmem>>, vector<8x16xf32>
    %15 = arith.truncf %14 : vector<8x16xf32> to vector<8x16xbf16>
    %cst_15 = arith.constant dense<0.000000e+00> : vector<8x32xf32>
    %16 = tpu.matmul %15, %0, %cst_15 {dimension_numbers = #tpu.dot_dimension_numbers<[1], [0], [0], [1], [0, 0, 1, 1], [], []>} : vector<8x16xbf16>, vector<16x32xbf16>, vector<8x32xf32> -> vector<8x32xf32>
    %17 = arith.truncf %16 : vector<8x32xf32> to vector<8x32xbf16>
    %cst_16 = arith.constant dense<0.000000e+00> : vector<8x64xf32>
    %18 = tpu.matmul %17, %1, %cst_16 {dimension_numbers = #tpu.dot_dimension_numbers<[1], [0], [0], [1], [0, 0, 1, 1], [], []>} : vector<8x32xbf16>, vector<32x64xbf16>, vector<8x64xf32> -> vector<8x64xf32>
    %19 = vector.broadcast %4 : vector<1x64xf32> to vector<8x64xf32>
    %20 = arith.addf %18, %19 : vector<8x64xf32>
    %cst_17 = arith.constant dense<0.000000e+00> : vector<64xf32>
    %21 = vector.multi_reduction <add>, %20, %cst_17 [0] : vector<8x64xf32> to vector<64xf32>
    %22 = vector.shape_cast %21 : vector<64xf32> to vector<1x64xf32>
    %cst_18 = arith.constant 8.000000e+00 : f32
    %23 = vector.broadcast %cst_18 : f32 to vector<1x64xf32>
    %24 = arith.divf %22, %23 : vector<1x64xf32>
    %25 = vector.broadcast %24 : vector<1x64xf32> to vector<8x64xf32>
    %26 = arith.subf %20, %25 : vector<8x64xf32>
    %27 = arith.mulf %26, %26 : vector<8x64xf32>
    %cst_19 = arith.constant dense<0.000000e+00> : vector<64xf32>
    %28 = vector.multi_reduction <add>, %27, %cst_19 [0] : vector<8x64xf32> to vector<64xf32>
    %29 = vector.shape_cast %28 : vector<64xf32> to vector<1x64xf32>
    %cst_20 = arith.constant 8.000000e+00 : f32
    %30 = vector.broadcast %cst_20 : f32 to vector<1x64xf32>
    %31 = arith.divf %29, %30 : vector<1x64xf32>
    %32 = vector.broadcast %24 : vector<1x64xf32> to vector<8x64xf32>
    %33 = arith.subf %20, %32 : vector<8x64xf32>
    %cst_21 = arith.constant 9.99999974E-6 : f32
    %34 = vector.broadcast %cst_21 : f32 to vector<1x64xf32>
    %35 = arith.addf %31, %34 : vector<1x64xf32>
    %36 = math.rsqrt %35 : vector<1x64xf32>
    %37 = vector.broadcast %36 : vector<1x64xf32> to vector<8x64xf32>
    %38 = arith.mulf %33, %37 : vector<8x64xf32>
    %39 = vector.broadcast %5 : vector<1x64xf32> to vector<8x64xf32>
    %40 = arith.mulf %38, %39 : vector<8x64xf32>
    %41 = vector.broadcast %6 : vector<1x64xf32> to vector<8x64xf32>
    %42 = arith.addf %40, %41 : vector<8x64xf32>
    %cst_22 = arith.constant 0.000000e+00 : f32
    %43 = vector.broadcast %cst_22 : f32 to vector<8x64xf32>
    %44 = arith.maximumf %42, %43 : vector<8x64xf32>
    %45 = arith.truncf %44 : vector<8x64xf32> to vector<8x64xbf16>
    %cst_23 = arith.constant dense<0.000000e+00> : vector<8x32xf32>
    %46 = tpu.matmul %45, %2, %cst_23 {dimension_numbers = #tpu.dot_dimension_numbers<[1], [0], [0], [1], [0, 0, 1, 1], [], []>} : vector<8x64xbf16>, vector<64x32xbf16>, vector<8x32xf32> -> vector<8x32xf32>
    %47 = vector.broadcast %7 : vector<1x32xf32> to vector<8x32xf32>
    %48 = arith.addf %46, %47 : vector<8x32xf32>
    %49 = arith.mulf %13, %13 : vector<8x32xf32>
    %cst_24 = arith.constant dense<0.000000e+00> : vector<8xf32>
    %50 = vector.multi_reduction <add>, %49, %cst_24 [1] : vector<8x32xf32> to vector<8xf32>
    %51 = vector.shape_cast %50 : vector<8xf32> to vector<8x1xf32>
    %52 = math.rsqrt %51 : vector<8x1xf32>
    %53 = vector.broadcast %52 : vector<8x1xf32> to vector<8x32xf32>
    %54 = arith.mulf %13, %53 : vector<8x32xf32>
    %55 = arith.mulf %48, %48 : vector<8x32xf32>
    %cst_25 = arith.constant dense<0.000000e+00> : vector<8xf32>
    %56 = vector.multi_reduction <add>, %55, %cst_25 [1] : vector<8x32xf32> to vector<8xf32>
    %57 = vector.shape_cast %56 : vector<8xf32> to vector<8x1xf32>
    %58 = math.rsqrt %57 : vector<8x1xf32>
    %59 = vector.broadcast %58 : vector<8x1xf32> to vector<8x32xf32>
    %60 = arith.mulf %48, %59 : vector<8x32xf32>
    %cst_26 = arith.constant dense<0.000000e+00> : vector<8x8xf32>
    %61 = tpu.matmul %54, %60, %cst_26 {dimension_numbers = #tpu.dot_dimension_numbers<[1], [1], [0], [0], [0, 0, 1, 0], [], []>} : vector<8x32xf32>, vector<8x32xf32>, vector<8x8xf32> -> vector<8x8xf32>
    %c0_27 = arith.constant 0 : index
    %c0_28 = arith.constant 0 : index
    %62 = memref.load %arg5[%c0_27, %c0_28] : memref<1x1xf32, #tpu.memory_space<smem>>
    %63 = vector.broadcast %62 : f32 to vector<8x8xf32>
    %64 = arith.mulf %61, %63 : vector<8x8xf32>
    %cst_29 = arith.constant dense<0.000000e+00> : vector<8x8xf32>
    %65 = tpu.matmul %15, %15, %cst_29 {dimension_numbers = #tpu.dot_dimension_numbers<[1], [1], [0], [0], [0, 0, 1, 0], [], []>} : vector<8x16xbf16>, vector<8x16xbf16>, vector<8x8xf32> -> vector<8x8xf32>
    %66 = tpu.iota {dimensions = array<i32: 0>} : vector<8x8xi32>
    %67 = tpu.iota {dimensions = array<i32: 1>} : vector<8x8xi32>
    %68 = arith.cmpi eq, %66, %67 : vector<8x8xi32>
    %cst_30 = arith.constant 0.000000e+00 : f32
    %69 = vector.broadcast %cst_30 : f32 to vector<8x8xf32>
    %70 = arith.select %68, %65, %69 : vector<8x8xi1>, vector<8x8xf32>
    %cst_31 = arith.constant dense<0.000000e+00> : vector<8xf32>
    %71 = vector.multi_reduction <add>, %70, %cst_31 [1] : vector<8x8xf32> to vector<8xf32>
    %72 = vector.shape_cast %71 : vector<8xf32> to vector<8x1xf32>
    %cst_32 = arith.constant dense<0.000000e+00> : vector<8xf32>
    %73 = vector.multi_reduction <add>, %70, %cst_32 [0] : vector<8x8xf32> to vector<8xf32>
    %74 = vector.shape_cast %73 : vector<8xf32> to vector<1x8xf32>
    %75 = vector.broadcast %72 : vector<8x1xf32> to vector<8x8xf32>
    %76 = vector.broadcast %74 : vector<1x8xf32> to vector<8x8xf32>
    %77 = arith.addf %75, %76 : vector<8x8xf32>
    %cst_33 = arith.constant 2.000000e+00 : f32
    %78 = vector.broadcast %cst_33 : f32 to vector<8x8xf32>
    %79 = arith.mulf %78, %65 : vector<8x8xf32>
    %80 = arith.subf %77, %79 : vector<8x8xf32>
    %cst_34 = arith.constant 0.000000e+00 : f32
    %81 = vector.broadcast %cst_34 : f32 to vector<8x8xf32>
    %82 = arith.cmpf oeq, %80, %81 : vector<8x8xf32>
    %83 = arith.extui %82 : vector<8x8xi1> to vector<8x8xi32>
    %84 = arith.sitofp %83 : vector<8x8xi32> to vector<8x8xf32>
    %cst_35 = arith.constant dense<0.000000e+00> : vector<8xf32>
    %85 = vector.multi_reduction <add>, %84, %cst_35 [0] : vector<8x8xf32> to vector<8xf32>
    %86 = vector.shape_cast %85 : vector<8xf32> to vector<1x8xf32>
    %87 = vector.broadcast %86 : vector<1x8xf32> to vector<8x8xf32>
    %88 = arith.divf %84, %87 : vector<8x8xf32>
    %cst_36 = arith.constant dense<0.000000e+00> : vector<8xf32>
    %89 = vector.multi_reduction <add>, %84, %cst_36 [1] : vector<8x8xf32> to vector<8xf32>
    %90 = vector.shape_cast %89 : vector<8xf32> to vector<8x1xf32>
    %91 = vector.broadcast %90 : vector<8x1xf32> to vector<8x8xf32>
    %92 = arith.divf %84, %91 : vector<8x8xf32>
    %cst_37 = arith.constant dense<0xFF800000> : vector<8xf32>
    %93 = vector.multi_reduction <maximumf>, %64, %cst_37 [0] : vector<8x8xf32> to vector<8xf32>
    %94 = vector.shape_cast %93 : vector<8xf32> to vector<1x8xf32>
    %95 = vector.broadcast %94 : vector<1x8xf32> to vector<8x8xf32>
    %96 = arith.subf %64, %95 : vector<8x8xf32>
    %97 = math.exp %96 : vector<8x8xf32>
    %cst_38 = arith.constant dense<0.000000e+00> : vector<8xf32>
    %98 = vector.multi_reduction <add>, %97, %cst_38 [0] : vector<8x8xf32> to vector<8xf32>
    %99 = vector.shape_cast %98 : vector<8xf32> to vector<1x8xf32>
    %100 = tpu.reciprocal %99 {approx = true} : vector<1x8xf32> -> vector<1x8xf32>
    %101 = vector.broadcast %100 : vector<1x8xf32> to vector<8x8xf32>
    %102 = arith.mulf %97, %101 : vector<8x8xf32>
    %cst_39 = arith.constant 0.000000e+00 : f32
    %cst_40 = arith.constant 1.000000e+00 : f32
    %103 = vector.broadcast %cst_39 : f32 to vector<8x8xf32>
    %104 = arith.maximumf %103, %102 : vector<8x8xf32>
    %105 = vector.broadcast %cst_40 : f32 to vector<8x8xf32>
    %106 = arith.minimumf %105, %104 : vector<8x8xf32>
    %107 = math.log %99 : vector<1x8xf32>
    %108 = vector.broadcast %107 : vector<1x8xf32> to vector<8x8xf32>
    %109 = arith.subf %96, %108 : vector<8x8xf32>
    %cst_41 = arith.constant dense<0xFF800000> : vector<8xf32>
    %110 = vector.multi_reduction <maximumf>, %64, %cst_41 [1] : vector<8x8xf32> to vector<8xf32>
    %111 = vector.shape_cast %110 : vector<8xf32> to vector<8x1xf32>
    %112 = vector.broadcast %111 : vector<8x1xf32> to vector<8x8xf32>
    %113 = arith.subf %64, %112 : vector<8x8xf32>
    %114 = math.exp %113 : vector<8x8xf32>
    %cst_42 = arith.constant dense<0.000000e+00> : vector<8xf32>
    %115 = vector.multi_reduction <add>, %114, %cst_42 [1] : vector<8x8xf32> to vector<8xf32>
    %116 = vector.shape_cast %115 : vector<8xf32> to vector<8x1xf32>
    %117 = tpu.reciprocal %116 {approx = true} : vector<8x1xf32> -> vector<8x1xf32>
    %118 = vector.broadcast %117 : vector<8x1xf32> to vector<8x8xf32>
    %119 = arith.mulf %114, %118 : vector<8x8xf32>
    %cst_43 = arith.constant 0.000000e+00 : f32
    %cst_44 = arith.constant 1.000000e+00 : f32
    %120 = vector.broadcast %cst_43 : f32 to vector<8x8xf32>
    %121 = arith.maximumf %120, %119 : vector<8x8xf32>
    %122 = vector.broadcast %cst_44 : f32 to vector<8x8xf32>
    %123 = arith.minimumf %122, %121 : vector<8x8xf32>
    %124 = math.log %116 : vector<8x1xf32>
    %125 = vector.broadcast %124 : vector<8x1xf32> to vector<8x8xf32>
    %126 = arith.subf %113, %125 : vector<8x8xf32>
    %cst_45 = arith.constant -1.000000e+02 : f32
    %127 = vector.broadcast %cst_45 : f32 to vector<8x8xf32>
    %128 = arith.maximumf %109, %127 : vector<8x8xf32>
    %cst_46 = arith.constant 1.000000e+00 : f32
    %129 = vector.broadcast %cst_46 : f32 to vector<8x8xf32>
    %130 = arith.subf %129, %106 : vector<8x8xf32>
    %cst_47 = arith.constant 0.000000e+00 : f32
    %131 = vector.broadcast %cst_47 : f32 to vector<8x8xf32>
    %132 = arith.maximumf %130, %131 : vector<8x8xf32>
    %133 = math.log %132 : vector<8x8xf32>
    %cst_48 = arith.constant -1.000000e+02 : f32
    %134 = vector.broadcast %cst_48 : f32 to vector<8x8xf32>
    %135 = arith.maximumf %133, %134 : vector<8x8xf32>
    %136 = arith.mulf %88, %128 : vector<8x8xf32>
    %cst_49 = arith.constant 1.000000e+00 : f32
    %137 = vector.broadcast %cst_49 : f32 to vector<8x8xf32>
    %138 = arith.subf %137, %88 : vector<8x8xf32>
    %139 = arith.mulf %138, %135 : vector<8x8xf32>
    %140 = arith.addf %136, %139 : vector<8x8xf32>
    %141 = vector.shape_cast %140 : vector<8x8xf32> to vector<1x8x8xf32>
    %cst_50 = arith.constant dense<0.000000e+00> : vector<1xf32>
    %142 = vector.multi_reduction <add>, %141, %cst_50 [1, 2] : vector<1x8x8xf32> to vector<1xf32>
    %143 = vector.shape_cast %142 : vector<1xf32> to vector<1x1x1xf32>
    %144 = vector.extract %143[0, 0, 0] : f32 from vector<1x1x1xf32>
    %cst_51 = arith.constant 6.400000e+01 : f32
    %145 = arith.divf %144, %cst_51 : f32
    %cst_52 = arith.constant 0.000000e+00 : f32
    %146 = arith.subf %cst_52, %145 : f32
    %cst_53 = arith.constant -1.000000e+02 : f32
    %147 = vector.broadcast %cst_53 : f32 to vector<8x8xf32>
    %148 = arith.maximumf %126, %147 : vector<8x8xf32>
    %cst_54 = arith.constant 1.000000e+00 : f32
    %149 = vector.broadcast %cst_54 : f32 to vector<8x8xf32>
    %150 = arith.subf %149, %123 : vector<8x8xf32>
    %cst_55 = arith.constant 0.000000e+00 : f32
    %151 = vector.broadcast %cst_55 : f32 to vector<8x8xf32>
    %152 = arith.maximumf %150, %151 : vector<8x8xf32>
    %153 = math.log %152 : vector<8x8xf32>
    %cst_56 = arith.constant -1.000000e+02 : f32
    %154 = vector.broadcast %cst_56 : f32 to vector<8x8xf32>
    %155 = arith.maximumf %153, %154 : vector<8x8xf32>
    %156 = arith.mulf %92, %148 : vector<8x8xf32>
    %cst_57 = arith.constant 1.000000e+00 : f32
    %157 = vector.broadcast %cst_57 : f32 to vector<8x8xf32>
    %158 = arith.subf %157, %92 : vector<8x8xf32>
    %159 = arith.mulf %158, %155 : vector<8x8xf32>
    %160 = arith.addf %156, %159 : vector<8x8xf32>
    %161 = vector.shape_cast %160 : vector<8x8xf32> to vector<1x8x8xf32>
    %cst_58 = arith.constant dense<0.000000e+00> : vector<1xf32>
    %162 = vector.multi_reduction <add>, %161, %cst_58 [1, 2] : vector<1x8x8xf32> to vector<1xf32>
    %163 = vector.shape_cast %162 : vector<1xf32> to vector<1x1x1xf32>
    %164 = vector.extract %163[0, 0, 0] : f32 from vector<1x1x1xf32>
    %cst_59 = arith.constant 6.400000e+01 : f32
    %165 = arith.divf %164, %cst_59 : f32
    %cst_60 = arith.constant 0.000000e+00 : f32
    %166 = arith.subf %cst_60, %165 : f32
    %167 = arith.addf %146, %166 : f32
    %cst_61 = arith.constant 5.000000e-01 : f32
    %168 = arith.mulf %cst_61, %167 : f32
    %cst_62 = arith.constant 0.000000e+00 : f32
    %169 = vector.broadcast %cst_62 : f32 to vector<8x128xf32>
    %c0_63 = arith.constant 0 : index
    %c0_64 = arith.constant 0 : index
    %170 = vector.load %arg6[%c0_63, %c0_64] : memref<8x128xf32, #tpu.memory_space<vmem>>, vector<8x128xf32>
    tpu.vector_store %arg6[%c0_63, %c0_64], %169 {strides = array<i32>} : memref<8x128xf32, #tpu.memory_space<vmem>>, vector<8x128xf32>,
    %c0_65 = arith.constant 0 : index
    %c0_66 = arith.constant 0 : index
    %171 = vector.load %arg6[%c0_65, %c0_66] : memref<8x128xf32, #tpu.memory_space<vmem>>, vector<8x32xf32>
    tpu.vector_store %arg6[%c0_65, %c0_66], %13 {strides = array<i32>} : memref<8x128xf32, #tpu.memory_space<vmem>>, vector<8x32xf32>,
    %c0_67 = arith.constant 0 : index
    %c32 = arith.constant 32 : index
    %172 = vector.load %arg6[%c0_67, %c32] : memref<8x128xf32, #tpu.memory_space<vmem>>, vector<8x8xf32>
    tpu.vector_store %arg6[%c0_67, %c32], %64 {strides = array<i32>} : memref<8x128xf32, #tpu.memory_space<vmem>>, vector<8x8xf32>,
    %173 = tpu.iota {dimensions = array<i32: 1>} : vector<1x8xi32>
    %c0_i32 = arith.constant 0 : i32
    %174 = vector.broadcast %c0_i32 : i32 to vector<1x8xi32>
    %175 = arith.cmpi eq, %173, %174 : vector<1x8xi32>
    %c1_i32 = arith.constant 1 : i32
    %176 = vector.broadcast %c1_i32 : i32 to vector<1x8xi32>
    %177 = arith.cmpi eq, %173, %176 : vector<1x8xi32>
    %c2_i32 = arith.constant 2 : i32
    %178 = vector.broadcast %c2_i32 : i32 to vector<1x8xi32>
    %179 = arith.cmpi eq, %173, %178 : vector<1x8xi32>
    %cst_68 = arith.constant 0.000000e+00 : f32
    %180 = vector.broadcast %166 : f32 to vector<1x8xf32>
    %181 = vector.broadcast %cst_68 : f32 to vector<1x8xf32>
    %182 = arith.select %179, %180, %181 : vector<1x8xi1>, vector<1x8xf32>
    %183 = vector.broadcast %146 : f32 to vector<1x8xf32>
    %184 = arith.select %177, %183, %182 : vector<1x8xi1>, vector<1x8xf32>
    %185 = vector.broadcast %168 : f32 to vector<1x8xf32>
    %186 = arith.select %175, %185, %184 : vector<1x8xi1>, vector<1x8xf32>
    %c0_69 = arith.constant 0 : index
    %c40 = arith.constant 40 : index
    %187 = vector.load %arg6[%c0_69, %c40] : memref<8x128xf32, #tpu.memory_space<vmem>>, vector<1x8xf32>
    tpu.vector_store %arg6[%c0_69, %c40], %186 {strides = array<i32>} : memref<8x128xf32, #tpu.memory_space<vmem>>, vector<1x8xf32>,
    return
  }
}

</mosaic_0001>

<llo_original>
// kernel: contrastive_step.1
$region0: #{contrastive_step.1}
  #allocation0 [shape = 'u32[]', space=smem, size = 0x4, offset = 0x4, fixed_abs, tag = 'smem constant byte address 0x4 - core index']
  #allocation1 [shape = 'u32[144,128]{1,0:T(1,128)}', space=vmem, size = 0x12000, scoped, tag = 'internal scratch']
  #allocation2 [shape = 'f32[1,1]{1,0:T(1,128)S(6)}', space=smem, size = 0x200, scoped, tag = 'scoped memory for contrastive_step.1']
  %s0 = inlined_call_operand.vmem [shape: f32[8,1024], index: 0, kind: input, shape index: {}]
  %s1 = inlined_call_operand.vmem [shape: f32[8,16], index: 1, kind: input, shape index: {}]
  %s2 = inlined_call_operand.vmem [shape: bf16[32,1024], index: 2, kind: input, shape index: {}]
  %s3 = inlined_call_operand.vmem [shape: bf16[112,128], index: 3, kind: input, shape index: {}]
  %s4 = inlined_call_operand.vmem [shape: f32[8,128], index: 4, kind: input, shape index: {}]
  %s5 = inlined_call_operand.<no memory space> [shape: f32[1,1], index: 5, kind: input, shape index: {}]
  %s6 = inlined_call_operand.vmem [shape: f32[8,128], index: 6, kind: output, shape index: {}]
  %s7 = sld [smem:[#allocation0]]
  $region34: #{contrastive_step.1} parent=0
    _
  %s9 = ssub.s32 1, %s7
  %s10 = scalar_select 0, %s9, %s7
  %11 = sst [smem:[#allocation2]] %s5
  // Predicated region
  $region2: #{contrastive_step.1} parent=0 // pred_check
    _
  $region3: #{contrastive_step.1} parent=0 // pred_check_branch
    %13 = sbr.rel (0) target = $region5
  $region4: #{contrastive_step.1} parent=0 // pred_region
    _
  $region5: #{contrastive_step.1} parent=0 // pred_fallthru
    _
  // Predicated region
  $region6: #{contrastive_step.1} parent=0 // pred_check
    _
  $region7: #{contrastive_step.1} parent=0 // pred_check_branch
    %15 = sbr.rel (0) target = $region9
  $region8: #{contrastive_step.1} parent=0 // pred_region
    _
  $region9: #{contrastive_step.1} parent=0 // pred_fallthru
    _
  // Predicated region
  $region10: #{contrastive_step.1} parent=0 // pred_check
    _
  $region11: #{contrastive_step.1} parent=0 // pred_check_branch
    %17 = sbr.rel (0) target = $region13
  $region12: #{contrastive_step.1} parent=0 // pred_region
    _
  $region13: #{contrastive_step.1} parent=0 // pred_fallthru
    _
  // Predicated region
  $region14: #{contrastive_step.1} parent=0 // pred_check
    _
  $region15: #{contrastive_step.1} parent=0 // pred_check_branch
    %19 = sbr.rel (0) target = $region17
  $region16: #{contrastive_step.1} parent=0 // pred_region
    _
  $region17: #{contrastive_step.1} parent=0 // pred_fallthru
    _
  // Predicated region
  $region18: #{contrastive_step.1} parent=0 // pred_check
    _
  $region19: #{contrastive_step.1} parent=0 // pred_check_branch
    %21 = sbr.rel (0) target = $region21
  $region20: #{contrastive_step.1} parent=0 // pred_region
    _
  $region21: #{contrastive_step.1} parent=0 // pred_fallthru
    _
  // Predicated region
  $region22: #{contrastive_step.1} parent=0 // pred_check
    _
  $region23: #{contrastive_step.1} parent=0 // pred_check_branch
    %23 = sbr.rel (0) target = $region25
  $region24: #{contrastive_step.1} parent=0 // pred_region
    _
  $region25: #{contrastive_step.1} parent=0 // pred_fallthru
    _
  %v25 = vld [vmem:[%s3] sm:$0xf]
  %v26 = vld [vmem:[%s3 + $0x4] sm:$0xf]
  %v27 = vld [vmem:[%s3 + $0x8] sm:$0xf]
  %v28 = vld [vmem:[%s3 + $0xc] sm:$0xf]
  %v29 = vld [vmem:[%s3 + $0x10] sm:$0xf]
  %v30 = vld [vmem:[%s3 + $0x14] sm:$0xf]
  %v31 = vld [vmem:[%s3 + $0x18] sm:$0xf]
  %v32 = vld [vmem:[%s3 + $0x1c] sm:$0xf]
  %v33 = vld [vmem:[%s3 + $0x20] sm:$0xf]
  %v34 = vld [vmem:[%s3 + $0x24] sm:$0xf]
  %v35 = vld [vmem:[%s3 + $0x28] sm:$0xf]
  %v36 = vld [vmem:[%s3 + $0x2c] sm:$0xf]
  %v37 = vld [vmem:[%s3 + $0x30] sm:$0xf]
  %v38 = vld [vmem:[%s3 + $0x34] sm:$0xf]
  %v39 = vld [vmem:[%s4] sm:$0x1]
  %v40 = vld [vmem:[%s4 + $0x1] sm:$0x1]
  %v41 = vld [vmem:[%s4 + $0x2] sm:$0x1]
  %v42 = vld [vmem:[%s4 + $0x3] sm:$0x1]
  %v43 = vld [vmem:[%s4 + $0x4] sm:$0x1]
  %v44 = vld [vmem:[%s0] sm:$0xff]
  %v45 = vld [vmem:[%s0 + $0x8] sm:$0xff]
  %v46 = vld [vmem:[%s0 + $0x10] sm:$0xff]
  %v47 = vld [vmem:[%s0 + $0x18] sm:$0xff]
  %v48 = vld [vmem:[%s0 + $0x20] sm:$0xff]
  %v49 = vld [vmem:[%s0 + $0x28] sm:$0xff]
  %v50 = vld [vmem:[%s0 + $0x30] sm:$0xff]
  %v51 = vld [vmem:[%s0 + $0x38] sm:$0xff]
  %v52 = vpack.c.bf16 %v44, %v44
  %v53 = vpack.c.bf16 %v45, %v45
  %v54 = vpack.c.bf16 %v46, %v46
  %v55 = vpack.c.bf16 %v47, %v47
  %v56 = vpack.c.bf16 %v48, %v48
  %v57 = vpack.c.bf16 %v49, %v49
  %v58 = vpack.c.bf16 %v50, %v50
  %v59 = vpack.c.bf16 %v51, %v51
  %v60 = vld [vmem:[%s2] sm:$0xff]
  %v61 = vld [vmem:[%s2 + $0x8] sm:$0xff]
  %v62 = vld [vmem:[%s2 + $0x10] sm:$0xff]
  %v63 = vld [vmem:[%s2 + $0x18] sm:$0xff]
  %v64 = vld [vmem:[%s2 + $0x20] sm:$0xff]
  %v65 = vld [vmem:[%s2 + $0x28] sm:$0xff]
  %v66 = vld [vmem:[%s2 + $0x30] sm:$0xff]
  %v67 = vld [vmem:[%s2 + $0x38] sm:$0xff]
  %v68 = vld [vmem:[%s2 + $0x40] sm:$0xff]
  %v69 = vld [vmem:[%s2 + $0x48] sm:$0xff]
  %v70 = vld [vmem:[%s2 + $0x50] sm:$0xff]
  %v71 = vld [vmem:[%s2 + $0x58] sm:$0xff]
  %v72 = vld [vmem:[%s2 + $0x60] sm:$0xff]
  %v73 = vld [vmem:[%s2 + $0x68] sm:$0xff]
  %v74 = vld [vmem:[%s2 + $0x70] sm:$0xff]
  %v75 = vld [vmem:[%s2 + $0x78] sm:$0xff]
  %v76 = vlaneseq
  %v77 = vshrl.u32 %v76, 7
  %v78 = vsub.s32 0, %v77
  %v79 = vrot.slane %v39, %v78
  %v96 = vunpack.c.l.b16 %v60
  %v97 = vunpack.c.h.b16 %v60
  %v98 = vunpack.c.l.b16 %v61
  %v99 = vunpack.c.h.b16 %v61
  %v100 = vunpack.c.l.b16 %v62
  %v101 = vunpack.c.h.b16 %v62
  %v102 = vunpack.c.l.b16 %v63
  %v103 = vunpack.c.h.b16 %v63
  %v104 = vunpack.c.l.b16 %v64
  %v105 = vunpack.c.h.b16 %v64
  %v106 = vunpack.c.l.b16 %v65
  %v107 = vunpack.c.h.b16 %v65
  %v108 = vunpack.c.l.b16 %v66
  %v109 = vunpack.c.h.b16 %v66
  %v110 = vunpack.c.l.b16 %v67
  %v111 = vunpack.c.h.b16 %v67
  %v112 = vunpack.c.l.b16 %v68
  %v113 = vunpack.c.h.b16 %v68
  %v114 = vunpack.c.l.b16 %v69
  %v115 = vunpack.c.h.b16 %v69
  %v116 = vunpack.c.l.b16 %v70
  %v117 = vunpack.c.h.b16 %v70
  %v118 = vunpack.c.l.b16 %v71
  %v119 = vunpack.c.h.b16 %v71
  %v120 = vunpack.c.l.b16 %v72
  %v121 = vunpack.c.h.b16 %v72
  %v122 = vunpack.c.l.b16 %v73
  %v123 = vunpack.c.h.b16 %v73
  %v124 = vunpack.c.l.b16 %v74
  %v125 = vunpack.c.h.b16 %v74
  %v126 = vunpack.c.l.b16 %v75
  %v127 = vunpack.c.h.b16 %v75
  %v128 = vpack.c.b16 %v104, %v96
  %v129 = vpack.c.b16 %v105, %v97
  %v130 = vpack.c.b16 %v106, %v98
  %v131 = vpack.c.b16 %v107, %v99
  %v132 = vpack.c.b16 %v108, %v100
  %v133 = vpack.c.b16 %v109, %v101
  %v134 = vpack.c.b16 %v110, %v102
  %v135 = vpack.c.b16 %v111, %v103
  %v136 = vpack.c.b16 %v120, %v112
  %v137 = vpack.c.b16 %v121, %v113
  %v138 = vpack.c.b16 %v122, %v114
  %v139 = vpack.c.b16 %v123, %v115
  %v140 = vpack.c.b16 %v124, %v116
  %v141 = vpack.c.b16 %v125, %v117
  %v142 = vpack.c.b16 %v126, %v118
  %v143 = vpack.c.b16 %v127, %v119
  %160 = vmatprep.subr.bf16.mxu0 %v129
  %161 = vmatpush1.bf16.xpose.msra.mxu0 %v128
  %162 = vmatprep.subr.bf16.mxu0 %v137
  %163 = vmatpush1.bf16.xpose.msra.mxu0 %v136
  %164 = vmatprep.subr.bf16.mxu0 0
  %165 = vmatpush1.bf16.xpose.msra.mxu0 0
  %166 = vmatprep.subr.bf16.mxu0 0
  %167 = vmatpush1.bf16.xpose.msra.mxu0 0
  %168 = vmatprep.subr.bf16.mxu0 0
  %169 = vmatpush1.bf16.xpose.msra.mxu0 0
  %170 = vmatprep.subr.bf16.mxu0 0
  %171 = vmatpush1.bf16.xpose.msra.mxu0 0
  %172 = vmatprep.subr.bf16.mxu0 0
  %173 = vmatpush1.bf16.xpose.msra.mxu0 0
  %174 = vmatprep.subr.bf16.mxu0 0
  %175 = vmatpush1.bf16.xpose.msra.mxu0 0
  %176 = vmatprep.subr.bf16.mxu0 0
  %177 = vmatpush1.bf16.xpose.msra.mxu0 0
  %178 = vmatprep.subr.bf16.mxu0 0
  %179 = vmatpush1.bf16.xpose.msra.mxu0 0
  %180 = vmatprep.subr.bf16.mxu0 0
  %181 = vmatpush1.bf16.xpose.msra.mxu0 0
  %182 = vmatprep.subr.bf16.mxu0 0
  %183 = vmatpush1.bf16.xpose.msra.mxu0 0
  %184 = vmatprep.subr.bf16.mxu0 0
  %185 = vmatpush1.bf16.xpose.msra.mxu0 0
  %186 = vmatprep.subr.bf16.mxu0 0
  %187 = vmatpush1.bf16.xpose.msra.mxu0 0
  %188 = vmatprep.subr.bf16.mxu0 0
  %189 = vmatpush1.bf16.xpose.msra.mxu0 0
  %190 = vmatprep.subr.bf16.mxu0 0
  %191 = vmatpush1.bf16.xpose.msra.mxu0 0
  %192 = vmatprep.mubr.bf16.mxu0 %v53
  %193 = vmatmul.mubr.bf16.gmra.mrb[0].mxu0 %v52
  %v194 = vpop.f32.mrb[0].mxu0
  %v195 = vadd.f32 %v79, %v194
  %v196 = vpop.f32.mrb[0].mxu0
  %v197 = vpop.f32.mrb[0].mxu0
  %v198 = vpop.f32.mrb[0].mxu0
  %199 = vdwg.mxu0
  %200 = vmatprep.subr.bf16.mxu0 %v131
  %201 = vmatpush1.bf16.xpose.msra.mxu0 %v130
  %202 = vmatprep.subr.bf16.mxu0 %v139
  %203 = vmatpush1.bf16.xpose.msra.mxu0 %v138
  %204 = vmatprep.subr.bf16.mxu0 0
  %205 = vmatpush1.bf16.xpose.msra.mxu0 0
  %206 = vmatprep.subr.bf16.mxu0 0
  %207 = vmatpush1.bf16.xpose.msra.mxu0 0
  %208 = vmatprep.subr.bf16.mxu0 0
  %209 = vmatpush1.bf16.xpose.msra.mxu0 0
  %210 = vmatprep.subr.bf16.mxu0 0
  %211 = vmatpush1.bf16.xpose.msra.mxu0 0
  %212 = vmatprep.subr.bf16.mxu0 0
  %213 = vmatpush1.bf16.xpose.msra.mxu0 0
  %214 = vmatprep.subr.bf16.mxu0 0
  %215 = vmatpush1.bf16.xpose.msra.mxu0 0
  %216 = vmatprep.subr.bf16.mxu0 0
  %217 = vmatpush1.bf16.xpose.msra.mxu0 0
  %218 = vmatprep.subr.bf16.mxu0 0
  %219 = vmatpush1.bf16.xpose.msra.mxu0 0
  %220 = vmatprep.subr.bf16.mxu0 0
  %221 = vmatpush1.bf16.xpose.msra.mxu0 0
  %222 = vmatprep.subr.bf16.mxu0 0
  %223 = vmatpush1.bf16.xpose.msra.mxu0 0
  %224 = vmatprep.subr.bf16.mxu0 0
  %225 = vmatpush1.bf16.xpose.msra.mxu0 0
  %226 = vmatprep.subr.bf16.mxu0 0
  %227 = vmatpush1.bf16.xpose.msra.mxu0 0
  %228 = vmatprep.subr.bf16.mxu0 0
  %229 = vmatpush1.bf16.xpose.msra.mxu0 0
  %230 = vmatprep.subr.bf16.mxu0 0
  %231 = vmatpush1.bf16.xpose.msra.mxu0 0
  %232 = vmatprep.mubr.bf16.mxu0 %v55
  %233 = vmatmul.mubr.bf16.gmra.mrb[0].mxu0 %v54
  %v234 = vpop.f32.mrb[0].mxu0
  %v235 = vadd.f32 %v195, %v234
  %v236 = vpop.f32.mrb[0].mxu0
  %v237 = vpop.f32.mrb[0].mxu0
  %v238 = vpop.f32.mrb[0].mxu0
  %239 = vdwg.mxu0
  %240 = vmatprep.subr.bf16.mxu0 %v133
  %241 = vmatpush1.bf16.xpose.msra.mxu0 %v132
  %242 = vmatprep.subr.bf16.mxu0 %v141
  %243 = vmatpush1.bf16.xpose.msra.mxu0 %v140
  %244 = vmatprep.subr.bf16.mxu0 0
  %245 = vmatpush1.bf16.xpose.msra.mxu0 0
  %246 = vmatprep.subr.bf16.mxu0 0
  %247 = vmatpush1.bf16.xpose.msra.mxu0 0
  %248 = vmatprep.subr.bf16.mxu0 0
  %249 = vmatpush1.bf16.xpose.msra.mxu0 0
  %250 = vmatprep.subr.bf16.mxu0 0
  %251 = vmatpush1.bf16.xpose.msra.mxu0 0
  %252 = vmatprep.subr.bf16.mxu0 0
  %253 = vmatpush1.bf16.xpose.msra.mxu0 0
  %254 = vmatprep.subr.bf16.mxu0 0
  %255 = vmatpush1.bf16.xpose.msra.mxu0 0
  %256 = vmatprep.subr.bf16.mxu0 0
  %257 = vmatpush1.bf16.xpose.msra.mxu0 0
  %258 = vmatprep.subr.bf16.mxu0 0
  %259 = vmatpush1.bf16.xpose.msra.mxu0 0
  %260 = vmatprep.subr.bf16.mxu0 0
  %261 = vmatpush1.bf16.xpose.msra.mxu0 0
  %262 = vmatprep.subr.bf16.mxu0 0
  %263 = vmatpush1.bf16.xpose.msra.mxu0 0
  %264 = vmatprep.subr.bf16.mxu0 0
  %265 = vmatpush1.bf16.xpose.msra.mxu0 0
  %266 = vmatprep.subr.bf16.mxu0 0
  %267 = vmatpush1.bf16.xpose.msra.mxu0 0
  %268 = vmatprep.subr.bf16.mxu0 0
  %269 = vmatpush1.bf16.xpose.msra.mxu0 0
  %270 = vmatprep.subr.bf16.mxu0 0
  %271 = vmatpush1.bf16.xpose.msra.mxu0 0
  %272 = vmatprep.mubr.bf16.mxu0 %v57
  %273 = vmatmul.mubr.bf16.gmra.mrb[0].mxu0 %v56
  %v274 = vpop.f32.mrb[0].mxu0
  %v275 = vadd.f32 %v235, %v274
  %v276 = vpop.f32.mrb[0].mxu0
  %v277 = vpop.f32.mrb[0].mxu0
  %v278 = vpop.f32.mrb[0].mxu0
  %279 = vdwg.mxu0
  %280 = vmatprep.subr.bf16.mxu0 %v135
  %281 = vmatpush1.bf16.xpose.msra.mxu0 %v134
  %282 = vmatprep.subr.bf16.mxu0 %v143
  %283 = vmatpush1.bf16.xpose.msra.mxu0 %v142
  %284 = vmatprep.subr.bf16.mxu0 0
  %285 = vmatpush1.bf16.xpose.msra.mxu0 0
  %286 = vmatprep.subr.bf16.mxu0 0
  %287 = vmatpush1.bf16.xpose.msra.mxu0 0
  %288 = vmatprep.subr.bf16.mxu0 0
  %289 = vmatpush1.bf16.xpose.msra.mxu0 0
  %290 = vmatprep.subr.bf16.mxu0 0
  %291 = vmatpush1.bf16.xpose.msra.mxu0 0
  %292 = vmatprep.subr.bf16.mxu0 0
  %293 = vmatpush1.bf16.xpose.msra.mxu0 0
  %294 = vmatprep.subr.bf16.mxu0 0
  %295 = vmatpush1.bf16.xpose.msra.mxu0 0
  %296 = vmatprep.subr.bf16.mxu0 0
  %297 = vmatpush1.bf16.xpose.msra.mxu0 0
  %298 = vmatprep.subr.bf16.mxu0 0
  %299 = vmatpush1.bf16.xpose.msra.mxu0 0
  %300 = vmatprep.subr.bf16.mxu0 0
  %301 = vmatpush1.bf16.xpose.msra.mxu0 0
  %302 = vmatprep.subr.bf16.mxu0 0
  %303 = vmatpush1.bf16.xpose.msra.mxu0 0
  %304 = vmatprep.subr.bf16.mxu0 0
  %305 = vmatpush1.bf16.xpose.msra.mxu0 0
  %306 = vmatprep.subr.bf16.mxu0 0
  %307 = vmatpush1.bf16.xpose.msra.mxu0 0
  %308 = vmatprep.subr.bf16.mxu0 0
  %309 = vmatpush1.bf16.xpose.msra.mxu0 0
  %310 = vmatprep.subr.bf16.mxu0 0
  %311 = vmatpush1.bf16.xpose.msra.mxu0 0
  %312 = vmatprep.mubr.bf16.mxu0 %v59
  %313 = vmatmul.mubr.bf16.gmra.mrb[0].mxu0 %v58
  %v314 = vpop.f32.mrb[0].mxu0
  %v315 = vadd.f32 %v275, %v314
  %v316 = vpop.f32.mrb[0].mxu0
  %v317 = vpop.f32.mrb[0].mxu0
  %v318 = vpop.f32.mrb[0].mxu0
  %319 = vdwg.mxu0
  %v320 = vld [vmem:[%s1] sm:$0xff]
  %v321 = vpack.c.bf16 %v320, %v320
  %v324 = vunpack.c.l.b16 %v25
  %v325 = vunpack.c.l.b16 %v26
  %v326 = vpack.c.b16 %v325, %v324
  %vm328 = vcmask 130048
  %v330 = vsel %vm328, %v321, 0
  %332 = vmatprep.subr.bf16.mxu0 0
  %333 = vmatpush1.bf16.msra.mxu0 %v326
  %334 = vmatprep.subr.bf16.mxu0 0
  %335 = vmatpush1.bf16.msra.mxu0 0
  %336 = vmatprep.subr.bf16.mxu0 0
  %337 = vmatpush1.bf16.msra.mxu0 0
  %338 = vmatprep.subr.bf16.mxu0 0
  %339 = vmatpush1.bf16.msra.mxu0 0
  %340 = vmatprep.subr.bf16.mxu0 0
  %341 = vmatpush1.bf16.msra.mxu0 0
  %342 = vmatprep.subr.bf16.mxu0 0
  %343 = vmatpush1.bf16.msra.mxu0 0
  %344 = vmatprep.subr.bf16.mxu0 0
  %345 = vmatpush1.bf16.msra.mxu0 0
  %346 = vmatprep.subr.bf16.mxu0 0
  %347 = vmatpush1.bf16.msra.mxu0 0
  %348 = vmatprep.subr.bf16.mxu0 0
  %349 = vmatpush1.bf16.msra.mxu0 0
  %350 = vmatprep.subr.bf16.mxu0 0
  %351 = vmatpush1.bf16.msra.mxu0 0
  %352 = vmatprep.subr.bf16.mxu0 0
  %353 = vmatpush1.bf16.msra.mxu0 0
  %354 = vmatprep.subr.bf16.mxu0 0
  %355 = vmatpush1.bf16.msra.mxu0 0
  %356 = vmatprep.subr.bf16.mxu0 0
  %357 = vmatpush1.bf16.msra.mxu0 0
  %358 = vmatprep.subr.bf16.mxu0 0
  %359 = vmatpush1.bf16.msra.mxu0 0
  %360 = vmatprep.subr.bf16.mxu0 0
  %361 = vmatpush1.bf16.msra.mxu0 0
  %362 = vmatprep.subr.bf16.mxu0 0
  %363 = vmatpush1.bf16.msra.mxu0 0
  %364 = vmatprep.mubr.bf16.mxu0 0
  %365 = vmatmul.mubr.bf16.gmra.mrb[0].mxu0 %v330
  %v366 = vpop.f32.mrb[0].mxu0
  %v367 = vadd.f32 0.0, %v366
  %v368 = vpop.f32.mrb[0].mxu0
  %v369 = vpop.f32.mrb[0].mxu0
  %v370 = vpop.f32.mrb[0].mxu0
  %371 = vdwg.mxu0
  %v372 = vpack.c.bf16 %v367, %v367
  %v373 = vlaneseq
  %v374 = vshrl.u32 %v373, 7
  %v375 = vsub.s32 0, %v374
  %v376 = vrot.slane %v40, %v375
  %v381 = vunpack.c.l.b16 %v27
  %v382 = vunpack.c.l.b16 %v28
  %v383 = vunpack.c.l.b16 %v29
  %v384 = vunpack.c.l.b16 %v30
  %v385 = vpack.c.b16 %v382, %v381
  %v386 = vpack.c.b16 %v384, %v383
  %vm389 = vcmask 261120
  %v391 = vsel %vm389, %v372, 0
  %393 = vmatprep.subr.bf16.mxu0 0
  %394 = vmatpush1.bf16.msra.mxu0 %v385
  %395 = vmatprep.subr.bf16.mxu0 0
  %396 = vmatpush1.bf16.msra.mxu0 %v386
  %397 = vmatprep.subr.bf16.mxu0 0
  %398 = vmatpush1.bf16.msra.mxu0 0
  %399 = vmatprep.subr.bf16.mxu0 0
  %400 = vmatpush1.bf16.msra.mxu0 0
  %401 = vmatprep.subr.bf16.mxu0 0
  %402 = vmatpush1.bf16.msra.mxu0 0
  %403 = vmatprep.subr.bf16.mxu0 0
  %404 = vmatpush1.bf16.msra.mxu0 0
  %405 = vmatprep.subr.bf16.mxu0 0
  %406 = vmatpush1.bf16.msra.mxu0 0
  %407 = vmatprep.subr.bf16.mxu0 0
  %408 = vmatpush1.bf16.msra.mxu0 0
  %409 = vmatprep.subr.bf16.mxu0 0
  %410 = vmatpush1.bf16.msra.mxu0 0
  %411 = vmatprep.subr.bf16.mxu0 0
  %412 = vmatpush1.bf16.msra.mxu0 0
  %413 = vmatprep.subr.bf16.mxu0 0
  %414 = vmatpush1.bf16.msra.mxu0 0
  %415 = vmatprep.subr.bf16.mxu0 0
  %416 = vmatpush1.bf16.msra.mxu0 0
  %417 = vmatprep.subr.bf16.mxu0 0
  %418 = vmatpush1.bf16.msra.mxu0 0
  %419 = vmatprep.subr.bf16.mxu0 0
  %420 = vmatpush1.bf16.msra.mxu0 0
  %421 = vmatprep.subr.bf16.mxu0 0
  %422 = vmatpush1.bf16.msra.mxu0 0
  %423 = vmatprep.subr.bf16.mxu0 0
  %424 = vmatpush1.bf16.msra.mxu0 0
  %425 = vmatprep.mubr.bf16.mxu0 0
  %426 = vmatmul.mubr.bf16.gmra.mrb[0].mxu0 %v391
  %v427 = vpop.f32.mrb[0].mxu0
  %v428 = vadd.f32 %v376, %v427
  %v429 = vpop.f32.mrb[0].mxu0
  %v430 = vpop.f32.mrb[0].mxu0
  %v431 = vpop.f32.mrb[0].mxu0
  %432 = vdwg.mxu0
  %vm433 = vcmask 523264
  %v434 = vsel %vm433, %v428, 0.0
  %v435 = vrot.slane %v434, 4
  %v436 = vadd.f32 %v434, %v435
  %v437 = vrot.slane %v436, 2
  %v438 = vadd.f32 %v436, %v437
  %v439 = vrot.slane %v438, 1
  %v440 = vadd.f32 %v438, %v439
  %v441 = vrcp.pop 8.0
  %v442 = vmul.f32 %v440, %v441
  %v443 = vsub.f32 %v428, %v442
  %v444 = vmul.f32 %v443, %v443
  %v445 = vsel %vm433, %v444, 0.0
  %v446 = vrot.slane %v445, 4
  %v447 = vadd.f32 %v445, %v446
  %v448 = vrot.slane %v447, 2
  %v449 = vadd.f32 %v447, %v448
  %v450 = vrot.slane %v449, 1
  %v451 = vadd.f32 %v449, %v450
  %v452 = vmul.f32 %v451, %v441
  %v453 = vadd.f32 %v452, 1e-05
  %v454 = vrsqrt.pop %v453
  %v455 = vmul.f32 %v443, %v454
  %v456 = vlaneseq
  %v457 = vshrl.u32 %v456, 7
  %v458 = vsub.s32 0, %v457
  %v459 = vrot.slane %v41, %v458
  %v460 = vmul.f32 %v455, %v459
  %v461 = vlaneseq
  %v462 = vshrl.u32 %v461, 7
  %v463 = vsub.s32 0, %v462
  %v464 = vrot.slane %v42, %v463
  %v465 = vadd.f32 %v460, %v464
  %v466 = vmax.f32 %v465, 0.0
  %v467 = vpack.c.bf16 %v466, %v466
  %v468 = vlaneseq
  %v469 = vshrl.u32 %v468, 7
  %v470 = vsub.s32 0, %v469
  %v471 = vrot.slane %v43, %v470
  %v480 = vunpack.c.l.b16 %v31
  %v481 = vunpack.c.l.b16 %v32
  %v482 = vunpack.c.l.b16 %v33
  %v483 = vunpack.c.l.b16 %v34
  %v484 = vunpack.c.l.b16 %v35
  %v485 = vunpack.c.l.b16 %v36
  %v486 = vunpack.c.l.b16 %v37
  %v487 = vunpack.c.l.b16 %v38
  %v488 = vpack.c.b16 %v481, %v480
  %v489 = vpack.c.b16 %v483, %v482
  %v490 = vpack.c.b16 %v485, %v484
  %v491 = vpack.c.b16 %v487, %v486
  %v497 = vsel %vm433, %v467, 0
  %499 = vmatprep.subr.bf16.mxu0 0
  %500 = vmatpush1.bf16.msra.mxu0 %v488
  %501 = vmatprep.subr.bf16.mxu0 0
  %502 = vmatpush1.bf16.msra.mxu0 %v489
  %503 = vmatprep.subr.bf16.mxu0 0
  %504 = vmatpush1.bf16.msra.mxu0 %v490
  %505 = vmatprep.subr.bf16.mxu0 0
  %506 = vmatpush1.bf16.msra.mxu0 %v491
  %507 = vmatprep.subr.bf16.mxu0 0
  %508 = vmatpush1.bf16.msra.mxu0 0
  %509 = vmatprep.subr.bf16.mxu0 0
  %510 = vmatpush1.bf16.msra.mxu0 0
  %511 = vmatprep.subr.bf16.mxu0 0
  %512 = vmatpush1.bf16.msra.mxu0 0
  %513 = vmatprep.subr.bf16.mxu0 0
  %514 = vmatpush1.bf16.msra.mxu0 0
  %515 = vmatprep.subr.bf16.mxu0 0
  %516 = vmatpush1.bf16.msra.mxu0 0
  %517 = vmatprep.subr.bf16.mxu0 0
  %518 = vmatpush1.bf16.msra.mxu0 0
  %519 = vmatprep.subr.bf16.mxu0 0
  %520 = vmatpush1.bf16.msra.mxu0 0
  %521 = vmatprep.subr.bf16.mxu0 0
  %522 = vmatpush1.bf16.msra.mxu0 0
  %523 = vmatprep.subr.bf16.mxu0 0
  %524 = vmatpush1.bf16.msra.mxu0 0
  %525 = vmatprep.subr.bf16.mxu0 0
  %526 = vmatpush1.bf16.msra.mxu0 0
  %527 = vmatprep.subr.bf16.mxu0 0
  %528 = vmatpush1.bf16.msra.mxu0 0
  %529 = vmatprep.subr.bf16.mxu0 0
  %530 = vmatpush1.bf16.msra.mxu0 0
  %531 = vmatprep.mubr.bf16.mxu0 0
  %532 = vmatmul.mubr.bf16.gmra.mrb[0].mxu0 %v497
  %v533 = vpop.f32.mrb[0].mxu0
  %v534 = vadd.f32 %v471, %v533
  %v535 = vpop.f32.mrb[0].mxu0
  %v536 = vpop.f32.mrb[0].mxu0
  %v537 = vpop.f32.mrb[0].mxu0
  %538 = vdwg.mxu0
  %v539 = vmul.f32 %v315, %v315
  %v540 = vsel %vm389, %v539, 0.0
  %541 = vadd.xlane.f32.xlu0 %v540
  %v542 = vpop.xlane.xlu0 %541
  %v543 = vrsqrt.pop %v542
  %v544 = vmul.f32 %v315, %v543
  %v545 = vmul.f32 %v534, %v534
  %v546 = vsel %vm389, %v545, 0.0
  %547 = vadd.xlane.f32.xlu0 %v546
  %v548 = vpop.xlane.xlu0 %547
  %v549 = vrsqrt.pop %v548
  %v550 = vmul.f32 %v534, %v549
  %v552 = vsel %vm389, %v544, 0
  %v555 = vsel %vm389, %v550, 0
  %557 = vmatprep.subr.mxu0 0.0
  %558 = vmatpush1.xpose.msra.mxu0 %v555
  %559 = vmatprep.subr.mxu0 0.0
  %560 = vmatpush1.xpose.msra.mxu0 0.0
  %561 = vmatprep.subr.mxu0 0.0
  %562 = vmatpush1.xpose.msra.mxu0 0.0
  %563 = vmatprep.subr.mxu0 0.0
  %564 = vmatpush1.xpose.msra.mxu0 0.0
  %565 = vmatprep.subr.mxu0 0.0
  %566 = vmatpush1.xpose.msra.mxu0 0.0
  %567 = vmatprep.subr.mxu0 0.0
  %568 = vmatpush1.xpose.msra.mxu0 0.0
  %569 = vmatprep.subr.mxu0 0.0
  %570 = vmatpush1.xpose.msra.mxu0 0.0
  %571 = vmatprep.subr.mxu0 0.0
  %572 = vmatpush1.xpose.msra.mxu0 0.0
  %573 = vmatprep.subr.mxu0 0.0
  %574 = vmatpush1.xpose.msra.mxu0 0.0
  %575 = vmatprep.subr.mxu0 0.0
  %576 = vmatpush1.xpose.msra.mxu0 0.0
  %577 = vmatprep.subr.mxu0 0.0
  %578 = vmatpush1.xpose.msra.mxu0 0.0
  %579 = vmatprep.subr.mxu0 0.0
  %580 = vmatpush1.xpose.msra.mxu0 0.0
  %581 = vmatprep.subr.mxu0 0.0
  %582 = vmatpush1.xpose.msra.mxu0 0.0
  %583 = vmatprep.subr.mxu0 0.0
  %584 = vmatpush1.xpose.msra.mxu0 0.0
  %585 = vmatprep.subr.mxu0 0.0
  %586 = vmatpush1.xpose.msra.mxu0 0.0
  %587 = vmatprep.subr.mxu0 0.0
  %588 = vmatpush1.xpose.msra.mxu0 0.0
  %589 = vmatprep.subr.mxu0 0.0
  %590 = vmatpush1.xpose.msra.mxu0 0.0
  %591 = vmatprep.subr.mxu0 0.0
  %592 = vmatpush1.xpose.msra.mxu0 0.0
  %593 = vmatprep.subr.mxu0 0.0
  %594 = vmatpush1.xpose.msra.mxu0 0.0
  %595 = vmatprep.subr.mxu0 0.0
  %596 = vmatpush1.xpose.msra.mxu0 0.0
  %597 = vmatprep.subr.mxu0 0.0
  %598 = vmatpush1.xpose.msra.mxu0 0.0
  %599 = vmatprep.subr.mxu0 0.0
  %600 = vmatpush1.xpose.msra.mxu0 0.0
  %601 = vmatprep.subr.mxu0 0.0
  %602 = vmatpush1.xpose.msra.mxu0 0.0
  %603 = vmatprep.subr.mxu0 0.0
  %604 = vmatpush1.xpose.msra.mxu0 0.0
  %605 = vmatprep.subr.mxu0 0.0
  %606 = vmatpush1.xpose.msra.mxu0 0.0
  %607 = vmatprep.subr.mxu0 0.0
  %608 = vmatpush1.xpose.msra.mxu0 0.0
  %609 = vmatprep.subr.mxu0 0.0
  %610 = vmatpush1.xpose.msra.mxu0 0.0
  %611 = vmatprep.subr.mxu0 0.0
  %612 = vmatpush1.xpose.msra.mxu0 0.0
  %613 = vmatprep.subr.mxu0 0.0
  %614 = vmatpush1.xpose.msra.mxu0 0.0
  %615 = vmatprep.subr.mxu0 0.0
  %616 = vmatpush1.xpose.msra.mxu0 0.0
  %617 = vmatprep.subr.mxu0 0.0
  %618 = vmatpush1.xpose.msra.mxu0 0.0
  %619 = vmatprep.subr.mxu0 0.0
  %620 = vmatpush1.xpose.msra.mxu0 0.0
  %621 = vmatprep.mubr.f32.mxu0 0.0
  %622 = vmatmul.mubr.f32.gmra.mrb[0].mxu0 %v552
  %v623 = vpop.f32.mrb[0].mxu0
  %v624 = vadd.f32 0.0, %v623
  %v625 = vpop.f32.mrb[0].mxu0
  %626 = vdwg.mxu0
  %s627 = sld [smem:[#allocation2]]
  %v628 = vstv %s627
  %v629 = vmul.f32 %v624, %v628
  %630 = vmatprep.subr.bf16.mxu0 0
  %631 = vmatpush1.bf16.xpose.msra.mxu0 %v330
  %632 = vmatprep.subr.bf16.mxu0 0
  %633 = vmatpush1.bf16.xpose.msra.mxu0 0
  %634 = vmatprep.subr.bf16.mxu0 0
  %635 = vmatpush1.bf16.xpose.msra.mxu0 0
  %636 = vmatprep.subr.bf16.mxu0 0
  %637 = vmatpush1.bf16.xpose.msra.mxu0 0
  %638 = vmatprep.subr.bf16.mxu0 0
  %639 = vmatpush1.bf16.xpose.msra.mxu0 0
  %640 = vmatprep.subr.bf16.mxu0 0
  %641 = vmatpush1.bf16.xpose.msra.mxu0 0
  %642 = vmatprep.subr.bf16.mxu0 0
  %643 = vmatpush1.bf16.xpose.msra.mxu0 0
  %644 = vmatprep.subr.bf16.mxu0 0
  %645 = vmatpush1.bf16.xpose.msra.mxu0 0
  %646 = vmatprep.subr.bf16.mxu0 0
  %647 = vmatpush1.bf16.xpose.msra.mxu0 0
  %648 = vmatprep.subr.bf16.mxu0 0
  %649 = vmatpush1.bf16.xpose.msra.mxu0 0
  %650 = vmatprep.subr.bf16.mxu0 0
  %651 = vmatpush1.bf16.xpose.msra.mxu0 0
  %652 = vmatprep.subr.bf16.mxu0 0
  %653 = vmatpush1.bf16.xpose.msra.mxu0 0
  %654 = vmatprep.subr.bf16.mxu0 0
  %655 = vmatpush1.bf16.xpose.msra.mxu0 0
  %656 = vmatprep.subr.bf16.mxu0 0
  %657 = vmatpush1.bf16.xpose.msra.mxu0 0
  %658 = vmatprep.subr.bf16.mxu0 0
  %659 = vmatpush1.bf16.xpose.msra.mxu0 0
  %660 = vmatprep.subr.bf16.mxu0 0
  %661 = vmatpush1.bf16.xpose.msra.mxu0 0
  %662 = vmatprep.mubr.bf16.mxu0 0
  %663 = vmatmul.mubr.bf16.gmra.mrb[0].mxu0 %v330
  %v664 = vpop.f32.mrb[0].mxu0
  %v665 = vadd.f32 0.0, %v664
  %v666 = vpop.f32.mrb[0].mxu0
  %v667 = vpop.f32.mrb[0].mxu0
  %v668 = vpop.f32.mrb[0].mxu0
  %669 = vdwg.mxu0
  %v670 = vlaneseq
  %v671 = vshrl.u32 %v670, 7
  %v672 = vlaneseq
  %v673 = vand.u32 %v672, 127
  %vm674 = vcmp.eq.s32.totalorder %v671, %v673
  %v675 = vsel %vm674, %v665, 0.0
  %vm676 = vcmask 64512
  %v677 = vsel %vm676, %v675, 0.0
  %678 = vadd.xlane.f32.xlu0 %v677
  %v679 = vpop.xlane.xlu0 %678
  %v680 = vrot.slane %v677, 4
  %v681 = vadd.f32 %v677, %v680
  %v682 = vrot.slane %v681, 2
  %v683 = vadd.f32 %v681, %v682
  %v684 = vrot.slane %v683, 1
  %v685 = vadd.f32 %v683, %v684
  %v686 = vadd.f32 %v679, %v685
  %v687 = vmul.f32 %v665, 2.0
  %v688 = vsub.f32 %v686, %v687
  %vm689 = vcmp.eq.f32.partialorder %v688, 0.0
  %v690 = vsel %vm689, 1, 0
  %v691 = vcvt.s32.f32 %v690
  %v692 = vsel %vm676, %v691, 0.0
  %v693 = vrot.slane %v692, 4
  %v694 = vadd.f32 %v692, %v693
  %v695 = vrot.slane %v694, 2
  %v696 = vadd.f32 %v694, %v695
  %v697 = vrot.slane %v696, 1
  %v698 = vadd.f32 %v696, %v697
  %v699 = vrcp.pop %v698
  %v700 = vmul.f32 %v691, %v699
  %701 = vadd.xlane.f32.xlu0 %v692
  %v702 = vpop.xlane.xlu0 %701
  %v703 = vrcp.pop %v702
  %v704 = vmul.f32 %v691, %v703
  %v705 = vsel %vm676, %v629, -inf
  %v706 = vrot.slane %v705, 4
  %v707 = vmax.f32 %v705, %v706
  %v708 = vrot.slane %v707, 2
  %v709 = vmax.f32 %v707, %v708
  %v710 = vrot.slane %v709, 1
  %v711 = vmax.f32 %v709, %v710
  %v712 = vsub.f32 %v629, %v711
  %v713 = vmul.f32 %v712, 1.442695
  %v714 = vpow.pop %v713
  %v715 = vsel %vm676, %v714, 0.0
  %v716 = vrot.slane %v715, 4
  %v717 = vadd.f32 %v715, %v716
  %v718 = vrot.slane %v717, 2
  %v719 = vadd.f32 %v717, %v718
  %v720 = vrot.slane %v719, 1
  %v721 = vadd.f32 %v719, %v720
  %v722 = vrcp.pop %v721
  %v723 = vmul.f32 %v714, %v722
  %v724 = vmax.f32 %v723, 0.0
  %v725 = vmin.f32 %v724, 1.0
  %v726 = vlog2.pop %v721
  %v727 = vmul.f32 %v726, 0.6931472
  %v728 = vsub.f32 %v712, %v727
  %729 = vmax.xlane.f32.xlu0 %v705
  %v730 = vpop.xlane.xlu0 %729
  %v731 = vsub.f32 %v629, %v730
  %v732 = vmul.f32 %v731, 1.442695
  %v733 = vpow.pop %v732
  %v734 = vsel %vm676, %v733, 0.0
  %735 = vadd.xlane.f32.xlu0 %v734
  %v736 = vpop.xlane.xlu0 %735
  %v737 = vrcp.pop %v736
  %v738 = vmul.f32 %v733, %v737
  %v739 = vmax.f32 %v738, 0.0
  %v740 = vmin.f32 %v739, 1.0
  %v741 = vlog2.pop %v736
  %v742 = vmul.f32 %v741, 0.6931472
  %v743 = vsub.f32 %v731, %v742
  %v744 = vmax.f32 %v728, -100.0
  %v745 = vsub.f32 1.0, %v725
  %v746 = vmax.f32 %v745, 0.0
  %v747 = vlog2.pop %v746
  %v748 = vmul.f32 %v747, 0.6931472
  %v749 = vmax.f32 %v748, -100.0
  %v750 = vmul.f32 %v700, %v744
  %v751 = vsub.f32 1.0, %v700
  %v752 = vmul.f32 %v751, %v749
  %v753 = vadd.f32 %v750, %v752
  %v754 = vsel %vm676, %v753, 0.0
  %755 = vadd.xlane.f32.xlu0 %v754
  %v756 = vpop.xlane.xlu0 %755
  %v757 = vrot.slane %v756, 4
  %v758 = vadd.f32 %v756, %v757
  %v759 = vrot.slane %v758, 2
  %v760 = vadd.f32 %v758, %v759
  %v761 = vrot.slane %v760, 1
  %v762 = vadd.f32 %v760, %v761
  %s763 = vtos %v762
  %v764 = vrcp.pop 64.0
  %s765 = vtos %v764
  %s766 = smul.f32 %s763, %s765
  %s767 = ssub.f32 0.0, %s766
  %v768 = vmax.f32 %v743, -100.0
  %v769 = vsub.f32 1.0, %v740
  %v770 = vmax.f32 %v769, 0.0
  %v771 = vlog2.pop %v770
  %v772 = vmul.f32 %v771, 0.6931472
  %v773 = vmax.f32 %v772, -100.0
  %v774 = vmul.f32 %v704, %v768
  %v775 = vsub.f32 1.0, %v704
  %v776 = vmul.f32 %v775, %v773
  %v777 = vadd.f32 %v774, %v776
  %v778 = vsel %vm676, %v777, 0.0
  %779 = vadd.xlane.f32.xlu0 %v778
  %v780 = vpop.xlane.xlu0 %779
  %v781 = vrot.slane %v780, 4
  %v782 = vadd.f32 %v780, %v781
  %v783 = vrot.slane %v782, 2
  %v784 = vadd.f32 %v782, %v783
  %v785 = vrot.slane %v784, 1
  %v786 = vadd.f32 %v784, %v785
  %s787 = vtos %v786
  %v788 = vrcp.pop 64.0
  %s789 = vtos %v788
  %s790 = smul.f32 %s787, %s789
  %s791 = ssub.f32 0.0, %s790
  %s792 = sadd.f32 %s767, %s791
  %s793 = smul.f32 %s792, 0.5
  %794 = vst [vmem:[%s6] sm:$0xff] 0.0
  %795 = vst.msk [vmem:[%s6] sm:$0xff] %vm389, %v315
  %797 = vrot.lane.b32.xlu0 %v629, 32
  %v798 = vpop.permute.xlu0 %797
  %vm800 = vcmask 326912
  %801 = vst.msk [vmem:[%s6] sm:$0xff] %vm800, %v798
  %vm802 = vcmp.eq.s32.totalorder %v673, 0
  %vm803 = vcmp.eq.s32.totalorder %v673, 1
  %vm804 = vcmp.eq.s32.totalorder %v673, 2
  %v805 = vstv %s791
  %v806 = vsel %vm804, %v805, 0.0
  %v807 = vstv %s767
  %v808 = vsel %vm803, %v807, %v806
  %v809 = vstv %s793
  %v810 = vsel %vm802, %v809, %v808
  %812 = vrot.lane.b32.xlu0 %v810, 40
  %v813 = vpop.permute.xlu0 %812
  %vm815 = vcmask 385344
  %816 = vst.msk [vmem:[%s6] sm:$0x1] %vm815, %v813
  // Predicated region
  $region26: #{contrastive_step.1} parent=0 // pred_check
    _
  $region27: #{contrastive_step.1} parent=0 // pred_check_branch
    %818 = sbr.rel (0) target = $region29
  $region28: #{contrastive_step.1} parent=0 // pred_region
    _
  $region29: #{contrastive_step.1} parent=0 // pred_fallthru
    _
  // Predicated region
  $region30: #{contrastive_step.1} parent=0 // pred_check
    _
  $region31: #{contrastive_step.1} parent=0 // pred_check_branch
    %820 = sbr.rel (0) target = $region33
  $region32: #{contrastive_step.1} parent=0 // pred_region
    _
  $region33: #{contrastive_step.1} parent=0 // pred_fallthru
    _

</llo_original>
